<compile_context>
chip_gen: v6e
topology: v6e:2x2x1
jax: 0.10.0
libtpu: 0.0.40
codegen_flags: <defaults>
</compile_context>

<pallas_src>
import functools

import jax
import jax.numpy as jnp
from jax.experimental import pallas as pl
from jax.experimental.pallas import tpu as pltpu


def _cdiv(a, b):
    return (a + b - 1) // b


def _round_up(x, m):
    return _cdiv(x, m) * m


def _tpu_info():
    """(device_kind lowercased, per-core VMEM capacity bytes) with safe fallbacks."""
    kind = "tpu"
    try:
        kind = jax.devices()[0].device_kind.lower()
    except Exception:
        pass
    cap = 0
    try:
        cap = int(pltpu.get_tpu_info().vmem_capacity_bytes)
    except Exception:
        cap = 0
    if cap <= 0:
        cap = (64 << 20) if "v7" in kind else (128 << 20)
    return kind, cap


# --------------------------------------------------------------------------- #
# Kernels                                                                      #
# --------------------------------------------------------------------------- #
def _silu_up(x_ref, wgu_ref, out_dtype):
    """Fused gate/up matmul + SiLU(gate)*up for one (row-tile, I-chunk)."""
    ti = wgu_ref.shape[1] // 2
    x = x_ref[...].astype(wgu_ref.dtype)       # no-op unless bf16 weights + f32 x
    gu = jnp.dot(x, wgu_ref[...], preferred_element_type=jnp.float32)
    gate = gu[:, :ti]
    up = gu[:, ti:]
    # SiLU via EUP exp + EUP approximate reciprocal (keeps VPU slots free).
    h = gate * up * pl.reciprocal(1.0 + jnp.exp(-gate), approx=True)
    return h.astype(out_dtype)


def _swiglu_kernel_acc(x_ref, wgu_ref, wd_ref, o_ref, acc_ref):
    """Grid (i rows, j out-cols, k I-chunks); k-innermost f32 accumulation."""
    k = pl.program_id(2)

    @pl.when(k == 0)
    def _():
        acc_ref[...] = jnp.zeros_like(acc_ref)

    h = _silu_up(x_ref, wgu_ref, wd_ref.dtype)
    acc_ref[...] += jnp.dot(h, wd_ref[...], preferred_element_type=jnp.float32)

    @pl.when(k == pl.num_programs(2) - 1)
    def _():
        o_ref[...] = acc_ref[...].astype(o_ref.dtype)


def _swiglu_kernel_single(x_ref, wgu_ref, wd_ref, o_ref):
    """nk == 1 specialization: no accumulator scratch, write output directly."""
    h = _silu_up(x_ref, wgu_ref, wd_ref.dtype)
    o_ref[...] = jnp.dot(h, wd_ref[...],
                         preferred_element_type=jnp.float32).astype(o_ref.dtype)


# --------------------------------------------------------------------------- #
# One-time weight preparation (call at weight-load time, NOT per forward)      #
# --------------------------------------------------------------------------- #
def pack_swiglu_weights(wg, wu, wd, *, ti=None, weights_dtype=None):
    """Pad I to a chunk multiple and pack per-chunk [gate_k | up_k] weights.

    wg, wu: (H, I)   pre-transposed gate/up projection weights
    wd    : (I, H)   pre-transposed down projection weights
    Returns (wgu_packed (H, nk*2*ti_eff), wd_padded (i_pad, H), ti_eff).
    """
    H, I = wg.shape
    assert wu.shape == (H, I) and wd.shape == (I, H)
    if weights_dtype is not None:
        wg, wu, wd = (w.astype(weights_dtype) for w in (wg, wu, wd))

    kind, _ = _tpu_info()
    if ti is None:
        ti = 256 if "v7" in kind else 1024          # generation-aware chunk size
    ti_eff = min(_round_up(ti, 128), _round_up(I, 128))
    i_pad = _round_up(I, ti_eff)

    # Zero padding is exact for SwiGLU: padded gate/up columns give
    # silu(0) * 0 = 0 and the matching zero rows of wd contribute nothing.
    if i_pad != I:
        wg = jnp.pad(wg, ((0, 0), (0, i_pad - I)))
        wu = jnp.pad(wu, ((0, 0), (0, i_pad - I)))
        wd = jnp.pad(wd, ((0, i_pad - I), (0, 0)))

    nk = i_pad // ti_eff
    wgu = jnp.concatenate(
        [wg.reshape(H, nk, ti_eff), wu.reshape(H, nk, ti_eff)], axis=2
    ).reshape(H, nk * 2 * ti_eff)
    return wgu, wd, ti_eff


# --------------------------------------------------------------------------- #
# Forward                                                                      #
# --------------------------------------------------------------------------- #
@functools.partial(jax.jit, static_argnames=("ti_eff", "tm", "tn"))
def swiglu_fwd(x, wgu, wd, *, ti_eff, tm=None, tn=None):
    """x: (..., H); wgu: (H, nk*2*ti_eff) packed; wd: (i_pad, H). Returns (..., H)."""
    orig_shape = x.shape
    H = orig_shape[-1]
    i_pad = wd.shape[0]
    assert i_pad % ti_eff == 0
    nk = i_pad // ti_eff
    assert wgu.shape == (H, 2 * i_pad) and wd.shape == (i_pad, H)

    x2 = x.reshape(-1, H)
    M = x2.shape[0]

    kind, vmem_cap = _tpu_info()
    is_v7 = "v7" in kind
    budget = int(0.85 * vmem_cap)               # leave headroom for compiler scratch

    itemsize = jnp.dtype(x.dtype).itemsize
    w_itemsize = jnp.dtype(wd.dtype).itemsize
    row_align = max(8, 32 // itemsize)          # f32 -> 8 rows, bf16 -> 16, int8 -> 32

    # --- balanced row tiles (avoid up-to-tm dead rows) ------------------------
    tm_target = tm if tm is not None else (512 if is_v7 else 1024)
    m_tiles = max(1, _cdiv(M, max(tm_target, row_align)))
    tm_eff = _round_up(_cdiv(M, m_tiles), row_align)
    m_grid = _cdiv(M, tm_eff)

    # --- output-column split (v7x decode: keep both TensorCores busy) ---------
    if tn is None:
        if is_v7 and m_grid == 1 and H % 256 == 0:
            tn = H // 2
        else:
            tn = H
    assert H % tn == 0 and (tn == H or tn % 128 == 0)
    n_grid = H // tn

    # --- per-step working set; shrink tm if it would overflow the VMEM budget -
    def _est(tm_e):
        return (2 * tm_e * H * itemsize                 # x tile (double-buffered)
                + 2 * H * 2 * ti_eff * w_itemsize       # fused [Wg|Wu] chunk
                + 2 * ti_eff * tn * w_itemsize          # Wd chunk
                + 2 * tm_e * tn * itemsize              # output tile
                + (tm_e * tn * 4 if nk > 1 else 0)      # f32 accumulator scratch
                + 2 * tm_e * 2 * ti_eff * 4)            # gu / h f32 temporaries

    while _est(tm_eff) > budget and tm_eff > row_align:
        tm_eff = max(row_align, _round_up(tm_eff // 2, row_align))
    m_grid = _cdiv(M, tm_eff)
    m_pad = m_grid * tm_eff
    vmem_limit = int(min(max(int(1.25 * _est(tm_eff)) + (2 << 20), 16 << 20), budget))

    # Pad activations only (weights were padded once at load time).  Padded rows
    # produce zero output rows which are sliced off below.
    if m_pad != M:
        x2 = jnp.pad(x2, ((0, m_pad - M), (0, 0)))

    grid = (m_grid, n_grid, nk)
    in_specs = [
        pl.BlockSpec((tm_eff, H), lambda i, j, k: (i, 0)),        # x rows
        pl.BlockSpec((H, 2 * ti_eff), lambda i, j, k: (0, k)),    # [Wg|Wu] chunk
        pl.BlockSpec((ti_eff, tn), lambda i, j, k: (k, j)),       # Wd chunk
    ]
    out_spec = pl.BlockSpec((tm_eff, tn), lambda i, j, k: (i, j))

    if nk > 1:
        kernel = _swiglu_kernel_acc
        scratch = [pltpu.VMEM((tm_eff, tn), jnp.float32)]
    else:
        kernel = _swiglu_kernel_single
        scratch = []

    out = pl.pallas_call(
        kernel,
        out_shape=jax.ShapeDtypeStruct((m_pad, H), x.dtype),
        grid_spec=pltpu.PrefetchScalarGridSpec(
            num_scalar_prefetch=0,
            grid=grid,
            in_specs=in_specs,
            out_specs=out_spec,
            scratch_shapes=scratch,
        ),
        compiler_params=pltpu.CompilerParams(
            dimension_semantics=("parallel", "parallel", "arbitrary"),
            vmem_limit_bytes=vmem_limit,
        ),
    )(x2, wgu, wd)

    return out[:M].reshape(orig_shape)


def swiglu_ref(x, wg, wu, wd):
    gate = x @ wg
    up = x @ wu
    return (jax.nn.silu(gate) * up) @ wd


if __name__ == "__main__":
    key = jax.random.PRNGKey(0)

    # --- test 1: small shapes consistent with the module (nk == 1 fast path) ---
    B, S, H, I = 2, 8, 32, 64
    kx, kg, ku, kd, k2 = jax.random.split(key, 5)
    x = jax.random.normal(kx, (B, S, H), dtype=jnp.float32)
    # nn.Linear stores (out, in); store pre-transposed (in, out) for right-multiply.
    wg = jax.random.uniform(kg, (H, I), minval=-1.0, maxval=1.0, dtype=jnp.float32) / jnp.sqrt(H)
    wu = jax.random.uniform(ku, (H, I), minval=-1.0, maxval=1.0, dtype=jnp.float32) / jnp.sqrt(H)
    wd = jax.random.uniform(kd, (I, H), minval=-1.0, maxval=1.0, dtype=jnp.float32) / jnp.sqrt(I)

    wgu_p, wd_p, ti_eff = pack_swiglu_weights(wg, wu, wd)     # one-time weight prep
    out = jax.block_until_ready(swiglu_fwd(x, wgu_p, wd_p, ti_eff=ti_eff))
    ref = swiglu_ref(x, wg, wu, wd)
    assert out.shape == (B, S, H)
    err = float(jnp.max(jnp.abs(out - ref)))
    assert jnp.allclose(out, ref, atol=2e-3, rtol=2e-3), err

    # --- test 2: exercise nk > 1 accumulation and the output-column split path ---
    B2, S2, H2, I2 = 5, 8, 256, 384
    kx2, kg2, ku2, kd2 = jax.random.split(k2, 4)
    x2 = jax.random.normal(kx2, (B2, S2, H2), dtype=jnp.float32)
    wg2 = jax.random.uniform(kg2, (H2, I2), minval=-1.0, maxval=1.0, dtype=jnp.float32) / jnp.sqrt(H2)
    wu2 = jax.random.uniform(ku2, (H2, I2), minval=-1.0, maxval=1.0, dtype=jnp.float32) / jnp.sqrt(H2)
    wd2 = jax.random.uniform(kd2, (I2, H2), minval=-1.0, maxval=1.0, dtype=jnp.float32) / jnp.sqrt(I2)

    wgu2, wd2_p, ti2 = pack_swiglu_weights(wg2, wu2, wd2, ti=128)   # nk = 3
    out2 = jax.block_until_ready(swiglu_fwd(x2, wgu2, wd2_p, ti_eff=ti2, tn=128))  # nj = 2
    ref2 = swiglu_ref(x2, wg2, wu2, wd2)
    assert out2.shape == (B2, S2, H2)
    err2 = float(jnp.max(jnp.abs(out2 - ref2)))
    assert jnp.allclose(out2, ref2, atol=2e-3, rtol=2e-3), err2

    print("KERNEL_OK")
</pallas_src>

<mosaic_0001>
module attributes {stable_mosaic.version = 11 : i64} {
  func.func @_swiglu_kernel_single(%arg0: i32, %arg1: i32, %arg2: i32, %arg3: memref<16x32xf32, #tpu.memory_space<vmem>>, %arg4: memref<32x256xf32, #tpu.memory_space<vmem>>, %arg5: memref<128x32xf32, #tpu.memory_space<vmem>>, %arg6: memref<16x32xf32, #tpu.memory_space<vmem>>) attributes {dimension_semantics = [#tpu.dimension_semantics<parallel>, #tpu.dimension_semantics<parallel>, #tpu.dimension_semantics<arbitrary>], iteration_bounds = array<i64: 1, 1, 1>, scalar_prefetch = 0 : i64, scratch_operands = 0 : i64, tpu.core_type = #tpu.core_type<tc>, window_params = [{transform_indices = @transform_0, window_bounds = array<i64: 16, 32>}, {transform_indices = @transform_1, window_bounds = array<i64: 32, 256>}, {transform_indices = @transform_2, window_bounds = array<i64: 128, 32>}, {transform_indices = @transform_3, window_bounds = array<i64: 16, 32>}]} {
    %c0 = arith.constant 0 : index
    %c0_0 = arith.constant 0 : index
    %0 = vector.load %arg3[%c0, %c0_0] : memref<16x32xf32, #tpu.memory_space<vmem>>, vector<16x32xf32>
    %c0_1 = arith.constant 0 : index
    %c0_2 = arith.constant 0 : index
    %1 = vector.load %arg4[%c0_1, %c0_2] : memref<32x256xf32, #tpu.memory_space<vmem>>, vector<32x256xf32>
    %cst = arith.constant dense<0.000000e+00> : vector<16x256xf32>
    %2 = tpu.matmul %0, %1, %cst {dimension_numbers = #tpu.dot_dimension_numbers<[1], [0], [0], [1], [0, 0, 1, 1], [], []>} : vector<16x32xf32>, vector<32x256xf32>, vector<16x256xf32> -> vector<16x256xf32>
    %3 = vector.extract_strided_slice %2 {offsets = [0, 0], sizes = [16, 128], strides = [1, 1]} : vector<16x256xf32> to vector<16x128xf32>
    %4 = vector.extract_strided_slice %2 {offsets = [0, 128], sizes = [16, 128], strides = [1, 1]} : vector<16x256xf32> to vector<16x128xf32>
    %5 = arith.mulf %3, %4 : vector<16x128xf32>
    %cst_3 = arith.constant 0.000000e+00 : f32
    %6 = vector.broadcast %cst_3 : f32 to vector<16x128xf32>
    %7 = arith.subf %6, %3 : vector<16x128xf32>
    %8 = math.exp %7 : vector<16x128xf32>
    %cst_4 = arith.constant 1.000000e+00 : f32
    %9 = vector.broadcast %cst_4 : f32 to vector<16x128xf32>
    %10 = arith.addf %9, %8 : vector<16x128xf32>
    %11 = tpu.reciprocal %10 {approx = true} : vector<16x128xf32> -> vector<16x128xf32>
    %12 = arith.mulf %5, %11 : vector<16x128xf32>
    %c0_5 = arith.constant 0 : index
    %c0_6 = arith.constant 0 : index
    %13 = vector.load %arg5[%c0_5, %c0_6] : memref<128x32xf32, #tpu.memory_space<vmem>>, vector<128x32xf32>
    %cst_7 = arith.constant dense<0.000000e+00> : vector<16x32xf32>
    %14 = tpu.matmul %12, %13, %cst_7 {dimension_numbers = #tpu.dot_dimension_numbers<[1], [0], [0], [1], [0, 0, 1, 1], [], []>} : vector<16x128xf32>, vector<128x32xf32>, vector<16x32xf32> -> vector<16x32xf32>
    %c0_8 = arith.constant 0 : index
    %c0_9 = arith.constant 0 : index
    %15 = vector.load %arg6[%c0_8, %c0_9] : memref<16x32xf32, #tpu.memory_space<vmem>>, vector<16x32xf32>
    tpu.vector_store %arg6[%c0_8, %c0_9], %14 {strides = array<i32>} : memref<16x32xf32, #tpu.memory_space<vmem>>, vector<16x32xf32>,
    return
  }
  func.func @transform_0(%arg0: i32, %arg1: i32, %arg2: i32) -> (i32, i32) {
    %c0_i32 = arith.constant 0 : i32
    %c0_i32_0 = arith.constant 0 : i32
    return %arg0, %c0_i32 : i32, i32
  }
  func.func @transform_1(%arg0: i32, %arg1: i32, %arg2: i32) -> (i32, i32) {
    %c0_i32 = arith.constant 0 : i32
    %c0_i32_0 = arith.constant 0 : i32
    return %c0_i32, %arg2 : i32, i32
  }
  func.func @transform_2(%arg0: i32, %arg1: i32, %arg2: i32) -> (i32, i32) {
    %c0_i32 = arith.constant 0 : i32
    return %arg2, %arg1 : i32, i32
  }
  func.func @transform_3(%arg0: i32, %arg1: i32, %arg2: i32) -> (i32, i32) {
    %c0_i32 = arith.constant 0 : i32
    return %arg0, %arg1 : i32, i32
  }
}

</mosaic_0001>

<llo_original>
// kernel: swiglu_fwd.1
$region0: #{swiglu_fwd.1}
  #allocation0 [shape = 'u32[]', space=smem, size = 0x4, offset = 0x4, fixed_abs, tag = 'smem constant byte address 0x4 - core index']
  #allocation1 [shape = 'u32[144,128]{1,0:T(1,128)}', space=vmem, size = 0x12000, scoped, tag = 'internal scratch']
  %s0 = inlined_call_operand.vmem [shape: f32[16,32], index: 0, kind: input, shape index: {}]
  %s1 = inlined_call_operand.vmem [shape: f32[32,256], index: 1, kind: input, shape index: {}]
  %s2 = inlined_call_operand.vmem [shape: f32[128,32], index: 2, kind: input, shape index: {}]
  %s3 = inlined_call_operand.hbm [shape: f32[16,32], index: 3, kind: output, shape index: {}]
  %s4 = sld [smem:[#allocation0]]
  $region22: #{swiglu_fwd.1} parent=0
    _
  %s6 = ssub.s32 1, %s4
  %s7 = scalar_select 0, %s6, %s4
  $region1: #{swiglu_fwd.1} parent=0
    #allocation2 [shape = 'u8[8192]{0}', space=vmem, size = 0x2000, scoped, tag = 'output window, operand 0, single buffered']
    #allocation3 [shape = 's32[1]{0}', space=sflag, size = 0x4, scoped, tag = 'scoped memory for swiglu_fwd.1']
    %8 = vsyncpa [#allocation3], 0
    // Predicated region
    $region2: #{swiglu_fwd.1} parent=1 // pred_check
      _
    $region3: #{swiglu_fwd.1} parent=1 // pred_check_branch
      %10 = sbr.rel (0) target = $region5
    $region4: #{swiglu_fwd.1} parent=1 // pred_region
      _
    $region5: #{swiglu_fwd.1} parent=1 // pred_fallthru
      _
    // Predicated region
    $region6: #{swiglu_fwd.1} parent=1 // pred_check
      _
    $region7: #{swiglu_fwd.1} parent=1 // pred_check_branch
      %12 = sbr.rel (0) target = $region9
    $region8: #{swiglu_fwd.1} parent=1 // pred_region
      _
    $region9: #{swiglu_fwd.1} parent=1 // pred_fallthru
      _
    // Predicated region
    $region10: #{swiglu_fwd.1} parent=1 // pred_check
      _
    $region11: #{swiglu_fwd.1} parent=1 // pred_check_branch
      %14 = sbr.rel (0) target = $region13
    $region12: #{swiglu_fwd.1} parent=1 // pred_region
      _
    $region13: #{swiglu_fwd.1} parent=1 // pred_fallthru
      _
    %v15 = vld [vmem:[%s0] sm:$0xff]
    %v16 = vld [vmem:[%s0 + $0x8] sm:$0xff]
    %v17 = vld [vmem:[%s1] sm:$0xff]
    %v18 = vld [vmem:[%s1 + $0x8] sm:$0xff]
    %v19 = vld [vmem:[%s1 + $0x10] sm:$0xff]
    %v20 = vld [vmem:[%s1 + $0x18] sm:$0xff]
    %v21 = vld [vmem:[%s1 + $0x20] sm:$0xff]
    %v22 = vld [vmem:[%s1 + $0x28] sm:$0xff]
    %v23 = vld [vmem:[%s1 + $0x30] sm:$0xff]
    %v24 = vld [vmem:[%s1 + $0x38] sm:$0xff]
    %vm25 = vcmask 261120
    %v27 = vsel %vm25, %v15, 0
    %v30 = vsel %vm25, %v16, 0
    %32 = vmatprep.subr.mxu0 0.0
    %33 = vmatpush1.msra.mxu0 0.0
    %34 = vmatprep.subr.mxu0 0.0
    %35 = vmatpush1.msra.mxu0 0.0
    %36 = vmatprep.subr.mxu0 0.0
    %37 = vmatpush1.msra.mxu0 0.0
    %38 = vmatprep.subr.mxu0 0.0
    %39 = vmatpush1.msra.mxu0 0.0
    %40 = vmatprep.subr.mxu0 0.0
    %41 = vmatpush1.msra.mxu0 0.0
    %42 = vmatprep.subr.mxu0 0.0
    %43 = vmatpush1.msra.mxu0 0.0
    %44 = vmatprep.subr.mxu0 0.0
    %45 = vmatpush1.msra.mxu0 0.0
    %46 = vmatprep.subr.mxu0 0.0
    %47 = vmatpush1.msra.mxu0 0.0
    %48 = vmatprep.subr.mxu0 0.0
    %49 = vmatpush1.msra.mxu0 0.0
    %50 = vmatprep.subr.mxu0 0.0
    %51 = vmatpush1.msra.mxu0 0.0
    %52 = vmatprep.subr.mxu0 0.0
    %53 = vmatpush1.msra.mxu0 0.0
    %54 = vmatprep.subr.mxu0 0.0
    %55 = vmatpush1.msra.mxu0 0.0
    %56 = vmatprep.subr.mxu0 %v24
    %57 = vmatpush1.msra.mxu0 %v23
    %58 = vmatprep.subr.mxu0 %v22
    %59 = vmatpush1.msra.mxu0 %v21
    %60 = vmatprep.subr.mxu0 %v20
    %61 = vmatpush1.msra.mxu0 %v19
    %62 = vmatprep.subr.mxu0 %v18
    %63 = vmatpush1.msra.mxu0 %v17
    %64 = vmatprep.subr.mxu0 0.0
    %65 = vmatpush2.msra.mxu0 0.0
    %66 = vmatprep.subr.mxu0 0.0
    %67 = vmatpush2.msra.mxu0 0.0
    %68 = vmatprep.subr.mxu0 0.0
    %69 = vmatpush2.msra.mxu0 0.0
    %70 = vmatprep.subr.mxu0 0.0
    %71 = vmatpush2.msra.mxu0 0.0
    %72 = vmatprep.subr.mxu0 0.0
    %73 = vmatpush2.msra.mxu0 0.0
    %74 = vmatprep.subr.mxu0 0.0
    %75 = vmatpush2.msra.mxu0 0.0
    %76 = vmatprep.subr.mxu0 0.0
    %77 = vmatpush2.msra.mxu0 0.0
    %78 = vmatprep.subr.mxu0 0.0
    %79 = vmatpush2.msra.mxu0 0.0
    %80 = vmatprep.subr.mxu0 0.0
    %81 = vmatpush2.msra.mxu0 0.0
    %82 = vmatprep.subr.mxu0 0.0
    %83 = vmatpush2.msra.mxu0 0.0
    %84 = vmatprep.subr.mxu0 0.0
    %85 = vmatpush2.msra.mxu0 0.0
    %86 = vmatprep.subr.mxu0 0.0
    %87 = vmatpush2.msra.mxu0 0.0
    %88 = vmatprep.subr.mxu0 0.0
    %89 = vmatpush2.msra.mxu0 0.0
    %90 = vmatprep.subr.mxu0 0.0
    %91 = vmatpush2.msra.mxu0 0.0
    %92 = vmatprep.subr.mxu0 0.0
    %93 = vmatpush2.msra.mxu0 0.0
    %94 = vmatprep.subr.mxu0 0.0
    %95 = vmatpush2.msra.mxu0 0.0
    %96 = vmatprep.mubr.f32.mxu0 0.0
    %97 = vmatmul.mubr.f32.gmra.mxu0 %v27
    %v98 = vpop.f32.mrf.mxu0
    %v99 = vadd.f32 0.0, %v98
    %v100 = vpop.f32.mrf.mxu0
    %v101 = vadd.f32 0.0, %v100
    %102 = vmatprep.mubr.f32.mxu0 0.0
    %103 = vmatmul.mubr.f32.gmra.mxu0 %v30
    %v104 = vpop.f32.mrf.mxu0
    %v105 = vadd.f32 0.0, %v104
    %v106 = vpop.f32.mrf.mxu0
    %v107 = vadd.f32 0.0, %v106
    %108 = vdwg.mxu0
    %v109 = vmul.f32 %v99, %v101
    %v110 = vmul.f32 %v105, %v107
    %v111 = vsub.f32 0.0, %v99
    %v112 = vsub.f32 0.0, %v105
    %v113 = vmul.f32 %v111, 1.442695
    %v114 = vpow.pop %v113
    %v115 = vmul.f32 %v112, 1.442695
    %v116 = vpow.pop %v115
    %v117 = vadd.f32 %v114, 1.0
    %v118 = vadd.f32 %v116, 1.0
    %v119 = vrcp.pop %v117
    %v120 = vrcp.pop %v118
    %v121 = vmul.f32 %v109, %v119
    %v122 = vmul.f32 %v110, %v120
    %v123 = vld [vmem:[%s2] sm:$0xff]
    %v124 = vld [vmem:[%s2 + $0x8] sm:$0xff]
    %v125 = vld [vmem:[%s2 + $0x10] sm:$0xff]
    %v126 = vld [vmem:[%s2 + $0x18] sm:$0xff]
    %v127 = vld [vmem:[%s2 + $0x20] sm:$0xff]
    %v128 = vld [vmem:[%s2 + $0x28] sm:$0xff]
    %v129 = vld [vmem:[%s2 + $0x30] sm:$0xff]
    %v130 = vld [vmem:[%s2 + $0x38] sm:$0xff]
    %v131 = vld [vmem:[%s2 + $0x40] sm:$0xff]
    %v132 = vld [vmem:[%s2 + $0x48] sm:$0xff]
    %v133 = vld [vmem:[%s2 + $0x50] sm:$0xff]
    %v134 = vld [vmem:[%s2 + $0x58] sm:$0xff]
    %v135 = vld [vmem:[%s2 + $0x60] sm:$0xff]
    %v136 = vld [vmem:[%s2 + $0x68] sm:$0xff]
    %v137 = vld [vmem:[%s2 + $0x70] sm:$0xff]
    %v138 = vld [vmem:[%s2 + $0x78] sm:$0xff]
    %139 = vmatprep.subr.mxu0 0.0
    %140 = vmatpush1.msra.mxu0 %v138
    %141 = vmatprep.subr.mxu0 0.0
    %142 = vmatpush1.msra.mxu0 %v137
    %143 = vmatprep.subr.mxu0 0.0
    %144 = vmatpush1.msra.mxu0 %v136
    %145 = vmatprep.subr.mxu0 0.0
    %146 = vmatpush1.msra.mxu0 %v135
    %147 = vmatprep.subr.mxu0 0.0
    %148 = vmatpush1.msra.mxu0 %v134
    %149 = vmatprep.subr.mxu0 0.0
    %150 = vmatpush1.msra.mxu0 %v133
    %151 = vmatprep.subr.mxu0 0.0
    %152 = vmatpush1.msra.mxu0 %v132
    %153 = vmatprep.subr.mxu0 0.0
    %154 = vmatpush1.msra.mxu0 %v131
    %155 = vmatprep.subr.mxu0 0.0
    %156 = vmatpush1.msra.mxu0 %v130
    %157 = vmatprep.subr.mxu0 0.0
    %158 = vmatpush1.msra.mxu0 %v129
    %159 = vmatprep.subr.mxu0 0.0
    %160 = vmatpush1.msra.mxu0 %v128
    %161 = vmatprep.subr.mxu0 0.0
    %162 = vmatpush1.msra.mxu0 %v127
    %163 = vmatprep.subr.mxu0 0.0
    %164 = vmatpush1.msra.mxu0 %v126
    %165 = vmatprep.subr.mxu0 0.0
    %166 = vmatpush1.msra.mxu0 %v125
    %167 = vmatprep.subr.mxu0 0.0
    %168 = vmatpush1.msra.mxu0 %v124
    %169 = vmatprep.subr.mxu0 0.0
    %170 = vmatpush1.msra.mxu0 %v123
    %171 = vmatprep.subr.mxu0 0.0
    %172 = vmatpush2.msra.mxu0 0.0
    %173 = vmatprep.subr.mxu0 0.0
    %174 = vmatpush2.msra.mxu0 0.0
    %175 = vmatprep.subr.mxu0 0.0
    %176 = vmatpush2.msra.mxu0 0.0
    %177 = vmatprep.subr.mxu0 0.0
    %178 = vmatpush2.msra.mxu0 0.0
    %179 = vmatprep.subr.mxu0 0.0
    %180 = vmatpush2.msra.mxu0 0.0
    %181 = vmatprep.subr.mxu0 0.0
    %182 = vmatpush2.msra.mxu0 0.0
    %183 = vmatprep.subr.mxu0 0.0
    %184 = vmatpush2.msra.mxu0 0.0
    %185 = vmatprep.subr.mxu0 0.0
    %186 = vmatpush2.msra.mxu0 0.0
    %187 = vmatprep.subr.mxu0 0.0
    %188 = vmatpush2.msra.mxu0 0.0
    %189 = vmatprep.subr.mxu0 0.0
    %190 = vmatpush2.msra.mxu0 0.0
    %191 = vmatprep.subr.mxu0 0.0
    %192 = vmatpush2.msra.mxu0 0.0
    %193 = vmatprep.subr.mxu0 0.0
    %194 = vmatpush2.msra.mxu0 0.0
    %195 = vmatprep.subr.mxu0 0.0
    %196 = vmatpush2.msra.mxu0 0.0
    %197 = vmatprep.subr.mxu0 0.0
    %198 = vmatpush2.msra.mxu0 0.0
    %199 = vmatprep.subr.mxu0 0.0
    %200 = vmatpush2.msra.mxu0 0.0
    %201 = vmatprep.subr.mxu0 0.0
    %202 = vmatpush2.msra.mxu0 0.0
    %203 = vmatprep.mubr.f32.mxu0 0.0
    %204 = vmatmul.mubr.f32.gmra.mxu0 %v121
    %v205 = vpop.f32.mrf.mxu0
    %v206 = vadd.f32 0.0, %v205
    %v207 = vpop.f32.mrf.mxu0
    %208 = vmatprep.mubr.f32.mxu0 0.0
    %209 = vmatmul.mubr.f32.gmra.mxu0 %v122
    %v210 = vpop.f32.mrf.mxu0
    %v211 = vadd.f32 0.0, %v210
    %v212 = vpop.f32.mrf.mxu0
    %213 = vdwg.mxu0
    %214 = vst.msk [vmem:[#allocation2] sm:$0xff] %vm25, %v206
    %215 = vst.msk [vmem:[#allocation2 + $0x8] sm:$0xff] %vm25, %v211
    // Predicated region
    $region14: #{swiglu_fwd.1} parent=1 // pred_check
      _
    $region15: #{swiglu_fwd.1} parent=1 // pred_check_branch
      %217 = sbr.rel (0) target = $region17
    $region16: #{swiglu_fwd.1} parent=1 // pred_region
      %s219 = ssub.s32 256, 256
      %220 = vsyncadd [#allocation3], %s219
      %s221 = sshll.u32 [#allocation2], 4
      %s222 = int_to_ptr.vmem [resolvable:$true] %s221
      %227 = dma.vmem_to_hbm [thread:$0]  %s222, 256, %s3, [#allocation3], 128, 128, 8
    $region17: #{swiglu_fwd.1} parent=1 // pred_fallthru
      _
    // Predicated region
    $region18: #{swiglu_fwd.1} parent=1 // pred_check
      _
    $region19: #{swiglu_fwd.1} parent=1 // pred_check_branch
      %229 = sbr.rel (0) target = $region21
    $region20: #{swiglu_fwd.1} parent=1 // pred_region
      %230 = dma.done [#allocation3], 256
    $region21: #{swiglu_fwd.1} parent=1 // pred_fallthru
      _
    %231 = vsyncpa [#allocation3], 1

</llo_original>
